<compile_context>
chip_gen: v7x
topology: tpu7x:2x2x1
jax: 0.10.0
libtpu: 0.0.40
codegen_flags: <defaults>
</compile_context>

<pallas_src>
import functools

import jax
import jax.numpy as jnp
from jax.experimental import pallas as pl
from jax.experimental.pallas import tpu as pltpu

_LANES = 128
_SUBLANES = 8
_ROW_ALIGN = 32                        # int8 sublane packing => 32-row tiles
_TARGET_STEP_BYTES = 8 * 1024 * 1024   # combined x+t bytes per grid step
_VMEM_LIMIT_BYTES = 32 * 1024 * 1024
_NUM_CORE_SPLITS = 2                   # v7x has 2 TensorCores; no-op elsewhere


def _round_up(x, m):
    return ((x + m - 1) // m) * m


def _tversky_sums_kernel(x_ref, t_ref, o_ref, *,
                         binarize_targets: bool,
                         block_rows: int,
                         total_rows: int,
                         inner_steps: int,
                         ragged: bool):
    """Accumulate per-split partial Sxt, Sx, St into the resident output block."""
    c = pl.program_id(0)          # core split (parallel)
    i = pl.program_id(1)          # streaming step within the split (arbitrary)

    # Output block index depends only on `c`, so o_ref is resident across the
    # whole inner loop: init once, accumulate every step.
    @pl.when(i == 0)
    def _():
        o_ref[...] = jnp.zeros_like(o_ref)

    x_raw = x_ref[...]
    t_raw = t_ref[...]

    def fold(v):
        # (block_rows, 128) -> (block_rows//8, 8, 128) -> (8, 128).
        # Tile-aligned reshape; the sum is pure VPU adds.
        return jnp.sum(v.reshape(block_rows // _SUBLANES, _SUBLANES, _LANES),
                       axis=0)

    def accumulate(xv, tv):
        xv = xv.astype(jnp.float32)
        tv = tv.astype(jnp.float32)
        if binarize_targets:
            tv = (tv > 0.0).astype(jnp.float32)
        xt = xv * tv
        o_ref[0, 0] += fold(xt)   # partial Sxt
        o_ref[0, 1] += fold(xv)   # partial Sx
        o_ref[0, 2] += fold(tv)   # partial St

    if not ragged:
        # Static guarantee that every block is fully in range: no masking.
        accumulate(x_raw, t_raw)
    else:
        gb = c * inner_steps + i                      # global block index
        needs_mask = (gb + 1) * block_rows > total_rows

        @pl.when(jnp.logical_not(needs_mask))
        def _():
            accumulate(x_raw, t_raw)

        @pl.when(needs_mask)
        def _():
            # Mask rows beyond the valid range BEFORE any arithmetic so stale
            # VMEM (possibly NaN when reinterpreted) cannot poison the sums.
            valid = total_rows - gb * block_rows      # may be <= 0 (fully OOB)
            row_ids = jax.lax.broadcasted_iota(
                jnp.int32, (block_rows, _LANES), 0)
            mask = row_ids < valid
            xm = jnp.where(mask, x_raw.astype(jnp.float32), 0.0)
            tm = jnp.where(mask, t_raw.astype(jnp.float32), 0.0)
            accumulate(xm, tm)


def _partial_sums_pallas(x2, t2, binarize_targets, max_block_rows=None):
    """Stream a (rows, 128) slab through the kernel; return (Sxt, Sx, St)."""
    rows = x2.shape[0]

    # Block sized so the combined per-step bytes stay ~constant across dtypes.
    bytes_per_row = _LANES * (x2.dtype.itemsize + t2.dtype.itemsize)
    cap = _TARGET_STEP_BYTES // bytes_per_row
    if max_block_rows is not None:
        cap = min(cap, max_block_rows)
    cap = max(_ROW_ALIGN, (cap // _ROW_ALIGN) * _ROW_ALIGN)
    block_rows = min(cap, _round_up(rows, _ROW_ALIGN))

    num_blocks = pl.cdiv(rows, block_rows)
    num_splits = _NUM_CORE_SPLITS if num_blocks >= _NUM_CORE_SPLITS else 1
    inner_steps = pl.cdiv(num_blocks, num_splits)
    ragged = (rows % block_rows != 0) or (num_splits * inner_steps != num_blocks)

    last_block = num_blocks - 1

    def row_map(c, i):
        # Clamp so padded (fully out-of-range) grid steps never issue an
        # out-of-bounds DMA; their contribution is zeroed by the mask.
        return (jnp.minimum(c * inner_steps + i, last_block), 0)

    kernel = functools.partial(
        _tversky_sums_kernel,
        binarize_targets=binarize_targets,
        block_rows=block_rows,
        total_rows=rows,
        inner_steps=inner_steps,
        ragged=ragged)

    out = pl.pallas_call(
        kernel,
        out_shape=jax.ShapeDtypeStruct(
            (num_splits, 3, _SUBLANES, _LANES), jnp.float32),
        grid_spec=pltpu.PrefetchScalarGridSpec(
            num_scalar_prefetch=0,
            grid=(num_splits, inner_steps),
            in_specs=[
                pl.BlockSpec((block_rows, _LANES), row_map),
                pl.BlockSpec((block_rows, _LANES), row_map),
            ],
            out_specs=pl.BlockSpec(
                (1, 3, _SUBLANES, _LANES), lambda c, i: (c, 0, 0, 0)),
        ),
        compiler_params=pltpu.CompilerParams(
            dimension_semantics=("parallel", "arbitrary"),
            vmem_limit_bytes=_VMEM_LIMIT_BYTES),
        cost_estimate=pl.CostEstimate(
            flops=5 * rows * _LANES,
            transcendentals=0,
            bytes_accessed=(x2.size * x2.dtype.itemsize
                            + t2.size * t2.dtype.itemsize
                            + num_splits * 3 * _SUBLANES * _LANES * 4)),
    )(x2, t2)

    sums = jnp.sum(out, axis=(0, 2, 3))   # (3,) = (Sxt, Sx, St)
    return sums[0], sums[1], sums[2]


def tversky_loss(inputs, targets, smooth=1.0, beta=0.5,
                 binarize_targets=False, max_block_rows=None):
    """JAX/Pallas equivalent of TverskyLoss.forward."""
    x = jnp.ravel(inputs)
    t = jnp.ravel(targets)

    # Predictions: keep native float dtype (cast in-kernel); promote anything
    # else to f32.
    if not jnp.issubdtype(x.dtype, jnp.floating):
        x = x.astype(jnp.float32)

    # Targets: keep floats native; stream bool / 1-byte ints as int8 (1 B/elem
    # on a bandwidth-bound kernel); promote wider ints to f32.
    if jnp.issubdtype(t.dtype, jnp.floating):
        pass
    elif t.dtype == jnp.bool_:
        t = t.astype(jnp.int8)
    elif jnp.issubdtype(t.dtype, jnp.integer) and t.dtype.itemsize == 1:
        pass
    else:
        t = t.astype(jnp.float32)

    n = x.shape[0]
    rows = n // _LANES
    n_main = rows * _LANES

    tp = jnp.float32(0.0)
    sx = jnp.float32(0.0)
    st = jnp.float32(0.0)

    if rows > 0:
        x2 = (x if n_main == n else x[:n_main]).reshape(rows, _LANES)
        t2 = (t if n_main == n else t[:n_main]).reshape(rows, _LANES)
        tp, sx, st = _partial_sums_pallas(
            x2, t2, binarize_targets, max_block_rows=max_block_rows)

    if n_main != n:
        # <128-element lane tail: cheaper to handle with plain jnp than to
        # materialize a padded copy of the full inputs.
        xt_tail = x[n_main:].astype(jnp.float32)
        tt_tail = t[n_main:].astype(jnp.float32)
        if binarize_targets:
            tt_tail = (tt_tail > 0.0).astype(jnp.float32)
        tp = tp + jnp.sum(xt_tail * tt_tail)
        sx = sx + jnp.sum(xt_tail)
        st = st + jnp.sum(tt_tail)

    fp = sx - tp   # ((1 - t) * x).sum()
    fn = st - tp   # (t * (1 - x)).sum()
    tversky = (tp + smooth) / (tp + beta * fp + (1.0 - beta) * fn + smooth)
    return 1.0 - tversky


def _reference(inputs, targets, smooth=1.0, beta=0.5, binarize_targets=False):
    x = jnp.ravel(inputs).astype(jnp.float32)
    t = jnp.ravel(targets).astype(jnp.float32)
    if binarize_targets:
        t = (t > 0.0).astype(jnp.float32)
    tp = jnp.sum(x * t)
    fp = jnp.sum((1.0 - t) * x)
    fn = jnp.sum(t * (1.0 - x))
    tversky = (tp + smooth) / (tp + beta * fp + (1.0 - beta) * fn + smooth)
    return 1.0 - tversky


if __name__ == "__main__":
    key = jax.random.PRNGKey(0)
    k1, k2, k3, k4, k5, k6 = jax.random.split(key, 6)

    # 1) NCHW-style segmentation predictions / float 0-1 targets.
    x = jax.random.uniform(k1, (2, 4, 16, 16), dtype=jnp.float32)
    t = (jax.random.uniform(k2, (2, 4, 16, 16), dtype=jnp.float32) > 0.5)
    tf = t.astype(jnp.float32)

    loss = jax.block_until_ready(tversky_loss(x, tf))
    ref = _reference(x, tf)
    assert jnp.allclose(loss, ref, rtol=1e-5, atol=1e-5), (loss, ref)

    # 2) binarize_targets=True path.
    loss_b = jax.block_until_ready(
        tversky_loss(x, tf * 2.0 - 1.0, binarize_targets=True))
    ref_b = _reference(x, tf * 2.0 - 1.0, binarize_targets=True)
    assert jnp.allclose(loss_b, ref_b, rtol=1e-5, atol=1e-5), (loss_b, ref_b)

    # 3) Ragged shape (1155 elems: 9 full rows + 3-element lane tail on host).
    xr = jax.random.uniform(k3, (3, 5, 7, 11), dtype=jnp.float32)
    tr = (jax.random.uniform(k4, (3, 5, 7, 11), dtype=jnp.float32) > 0.5)
    trf = tr.astype(jnp.float32)
    loss_r = jax.block_until_ready(tversky_loss(xr, trf))
    ref_r = _reference(xr, trf)
    assert jnp.allclose(loss_r, ref_r, rtol=1e-5, atol=1e-5), (loss_r, ref_r)

    # 4) bfloat16 inputs / bfloat16 targets streamed natively, cast in-kernel.
    loss_bf = jax.block_until_ready(
        tversky_loss(x.astype(jnp.bfloat16), tf.astype(jnp.bfloat16)))
    ref_bf = _reference(x.astype(jnp.bfloat16), tf.astype(jnp.bfloat16))
    assert jnp.allclose(loss_bf, ref_bf, rtol=1e-4, atol=1e-4), (loss_bf, ref_bf)

    # 5) bfloat16 inputs + bool targets (1-byte int8 target streaming path).
    loss_bool = jax.block_until_ready(
        tversky_loss(x.astype(jnp.bfloat16), t))
    ref_bool = _reference(x.astype(jnp.bfloat16), t)
    assert jnp.allclose(loss_bool, ref_bool, rtol=1e-4, atol=1e-4), (
        loss_bool, ref_bool)

    # 6) Multi-block + 2-way split with a ragged/padded last block
    #    (rows=160, forced block_rows=32 -> 5 blocks over a 2x3 padded grid).
    xm = jax.random.uniform(k5, (5, 4, 32, 32), dtype=jnp.float32)
    tm = (jax.random.uniform(k6, (5, 4, 32, 32), dtype=jnp.float32) > 0.5)
    loss_m = jax.block_until_ready(tversky_loss(xm, tm, max_block_rows=32))
    ref_m = _reference(xm, tm)
    assert jnp.allclose(loss_m, ref_m, rtol=1e-5, atol=1e-5), (loss_m, ref_m)

    # 7) Multi-block + 2-way split, exactly even (no masking path at all).
    xe = xm[:2]
    te = tm[:2]
    loss_e = jax.block_until_ready(tversky_loss(xe, te, max_block_rows=32))
    ref_e = _reference(xe, te)
    assert jnp.allclose(loss_e, ref_e, rtol=1e-5, atol=1e-5), (loss_e, ref_e)

    print("KERNEL_OK")
</pallas_src>

<mosaic_0001>
module attributes {stable_mosaic.version = 11 : i64} {
  func.func @_tversky_sums_kernel(%arg0: i32, %arg1: i32, %arg2: memref<32x128xf32, #tpu.memory_space<vmem>>, %arg3: memref<32x128xf32, #tpu.memory_space<vmem>>, %arg4: memref<1x3x8x128xf32, #tpu.memory_space<vmem>>) attributes {dimension_semantics = [#tpu.dimension_semantics<parallel>, #tpu.dimension_semantics<arbitrary>], iteration_bounds = array<i64: 1, 1>, scalar_prefetch = 0 : i64, scratch_operands = 0 : i64, tpu.core_type = #tpu.core_type<tc>, window_params = [{transform_indices = @transform_0, window_bounds = array<i64: 32, 128>}, {transform_indices = @transform_1, window_bounds = array<i64: 32, 128>}, {transform_indices = @transform_2, window_bounds = array<i64: 1, 3, 8, 128>}]} {
    %c0_i32 = arith.constant 0 : i32
    %0 = arith.cmpi eq, %arg1, %c0_i32 : i32
    %1 = arith.extui %0 : i1 to i32
    %c0_i32_0 = arith.constant 0 : i32
    %2 = arith.cmpi ne, %1, %c0_i32_0 : i32
    scf.if %2 {
      %cst = arith.constant 0.000000e+00 : f32
      %15 = vector.broadcast %cst : f32 to vector<1x3x8x128xf32>
      %c0_7 = arith.constant 0 : index
      %c0_8 = arith.constant 0 : index
      %c0_9 = arith.constant 0 : index
      %c0_10 = arith.constant 0 : index
      %16 = vector.load %arg4[%c0_7, %c0_8, %c0_9, %c0_10] : memref<1x3x8x128xf32, #tpu.memory_space<vmem>>, vector<1x3x8x128xf32>
      tpu.vector_store %arg4[%c0_7, %c0_8, %c0_9, %c0_10], %15 {strides = array<i32>} : memref<1x3x8x128xf32, #tpu.memory_space<vmem>>, vector<1x3x8x128xf32>,
    } else {
    }
    %c0 = arith.constant 0 : index
    %c0_1 = arith.constant 0 : index
    %3 = vector.load %arg2[%c0, %c0_1] : memref<32x128xf32, #tpu.memory_space<vmem>>, vector<32x128xf32>
    %c0_2 = arith.constant 0 : index
    %c0_3 = arith.constant 0 : index
    %4 = vector.load %arg3[%c0_2, %c0_3] : memref<32x128xf32, #tpu.memory_space<vmem>>, vector<32x128xf32>
    %c1_i32 = arith.constant 1 : i32
    %5 = arith.muli %arg0, %c1_i32 : i32
    %6 = arith.addi %5, %arg1 : i32
    %c1_i32_4 = arith.constant 1 : i32
    %7 = arith.addi %6, %c1_i32_4 : i32
    %c32_i32 = arith.constant 32 : i32
    %8 = arith.muli %7, %c32_i32 : i32
    %c16_i32 = arith.constant 16 : i32
    %9 = arith.cmpi sgt, %8, %c16_i32 : i32
    %true = arith.constant true
    %10 = arith.xori %9, %true : i1
    %11 = arith.extui %10 : i1 to i32
    %c0_i32_5 = arith.constant 0 : i32
    %12 = arith.cmpi ne, %11, %c0_i32_5 : i32
    scf.if %12 {
      %15 = arith.mulf %3, %4 : vector<32x128xf32>
      %c0_7 = arith.constant 0 : index
      %c0_8 = arith.constant 0 : index
      %c0_9 = arith.constant 0 : index
      %c0_10 = arith.constant 0 : index
      %16 = vector.load %arg4[%c0_7, %c0_8, %c0_9, %c0_10] : memref<1x3x8x128xf32, #tpu.memory_space<vmem>>, vector<1x1x8x128xf32>
      %17 = vector.shape_cast %16 : vector<1x1x8x128xf32> to vector<8x128xf32>
      %18 = vector.shape_cast %15 : vector<32x128xf32> to vector<4x8x128xf32>
      %cst = arith.constant dense<0.000000e+00> : vector<8x128xf32>
      %19 = vector.multi_reduction <add>, %18, %cst [0] : vector<4x8x128xf32> to vector<8x128xf32>
      %20 = arith.addf %17, %19 : vector<8x128xf32>
      %c0_11 = arith.constant 0 : index
      %c0_12 = arith.constant 0 : index
      %c0_13 = arith.constant 0 : index
      %c0_14 = arith.constant 0 : index
      %21 = vector.load %arg4[%c0_11, %c0_12, %c0_13, %c0_14] : memref<1x3x8x128xf32, #tpu.memory_space<vmem>>, vector<1x1x8x128xf32>
      %22 = vector.shape_cast %21 : vector<1x1x8x128xf32> to vector<8x128xf32>
      %23 = vector.shape_cast %20 : vector<8x128xf32> to vector<1x1x8x128xf32>
      tpu.vector_store %arg4[%c0_11, %c0_12, %c0_13, %c0_14], %23 {strides = array<i32>} : memref<1x3x8x128xf32, #tpu.memory_space<vmem>>, vector<1x1x8x128xf32>,
      %c0_15 = arith.constant 0 : index
      %c1 = arith.constant 1 : index
      %c0_16 = arith.constant 0 : index
      %c0_17 = arith.constant 0 : index
      %24 = vector.load %arg4[%c0_15, %c1, %c0_16, %c0_17] : memref<1x3x8x128xf32, #tpu.memory_space<vmem>>, vector<1x1x8x128xf32>
      %25 = vector.shape_cast %24 : vector<1x1x8x128xf32> to vector<8x128xf32>
      %26 = vector.shape_cast %3 : vector<32x128xf32> to vector<4x8x128xf32>
      %cst_18 = arith.constant dense<0.000000e+00> : vector<8x128xf32>
      %27 = vector.multi_reduction <add>, %26, %cst_18 [0] : vector<4x8x128xf32> to vector<8x128xf32>
      %28 = arith.addf %25, %27 : vector<8x128xf32>
      %c0_19 = arith.constant 0 : index
      %c1_20 = arith.constant 1 : index
      %c0_21 = arith.constant 0 : index
      %c0_22 = arith.constant 0 : index
      %29 = vector.load %arg4[%c0_19, %c1_20, %c0_21, %c0_22] : memref<1x3x8x128xf32, #tpu.memory_space<vmem>>, vector<1x1x8x128xf32>
      %30 = vector.shape_cast %29 : vector<1x1x8x128xf32> to vector<8x128xf32>
      %31 = vector.shape_cast %28 : vector<8x128xf32> to vector<1x1x8x128xf32>
      tpu.vector_store %arg4[%c0_19, %c1_20, %c0_21, %c0_22], %31 {strides = array<i32>} : memref<1x3x8x128xf32, #tpu.memory_space<vmem>>, vector<1x1x8x128xf32>,
      %c0_23 = arith.constant 0 : index
      %c2 = arith.constant 2 : index
      %c0_24 = arith.constant 0 : index
      %c0_25 = arith.constant 0 : index
      %32 = vector.load %arg4[%c0_23, %c2, %c0_24, %c0_25] : memref<1x3x8x128xf32, #tpu.memory_space<vmem>>, vector<1x1x8x128xf32>
      %33 = vector.shape_cast %32 : vector<1x1x8x128xf32> to vector<8x128xf32>
      %34 = vector.shape_cast %4 : vector<32x128xf32> to vector<4x8x128xf32>
      %cst_26 = arith.constant dense<0.000000e+00> : vector<8x128xf32>
      %35 = vector.multi_reduction <add>, %34, %cst_26 [0] : vector<4x8x128xf32> to vector<8x128xf32>
      %36 = arith.addf %33, %35 : vector<8x128xf32>
      %c0_27 = arith.constant 0 : index
      %c2_28 = arith.constant 2 : index
      %c0_29 = arith.constant 0 : index
      %c0_30 = arith.constant 0 : index
      %37 = vector.load %arg4[%c0_27, %c2_28, %c0_29, %c0_30] : memref<1x3x8x128xf32, #tpu.memory_space<vmem>>, vector<1x1x8x128xf32>
      %38 = vector.shape_cast %37 : vector<1x1x8x128xf32> to vector<8x128xf32>
      %39 = vector.shape_cast %36 : vector<8x128xf32> to vector<1x1x8x128xf32>
      tpu.vector_store %arg4[%c0_27, %c2_28, %c0_29, %c0_30], %39 {strides = array<i32>} : memref<1x3x8x128xf32, #tpu.memory_space<vmem>>, vector<1x1x8x128xf32>,
    } else {
    }
    %13 = arith.extui %9 : i1 to i32
    %c0_i32_6 = arith.constant 0 : i32
    %14 = arith.cmpi ne, %13, %c0_i32_6 : i32
    scf.if %14 {
      %c32_i32_7 = arith.constant 32 : i32
      %15 = arith.muli %6, %c32_i32_7 : i32
      %c16_i32_8 = arith.constant 16 : i32
      %16 = arith.subi %c16_i32_8, %15 : i32
      %17 = tpu.iota {dimensions = array<i32: 0>} : vector<32x128xi32>
      %18 = vector.broadcast %16 : i32 to vector<32x128xi32>
      %19 = arith.cmpi slt, %17, %18 : vector<32x128xi32>
      %cst = arith.constant 0.000000e+00 : f32
      %20 = vector.broadcast %cst : f32 to vector<32x128xf32>
      %21 = arith.select %19, %3, %20 : vector<32x128xi1>, vector<32x128xf32>
      %cst_9 = arith.constant 0.000000e+00 : f32
      %22 = vector.broadcast %cst_9 : f32 to vector<32x128xf32>
      %23 = arith.select %19, %4, %22 : vector<32x128xi1>, vector<32x128xf32>
      %24 = arith.mulf %21, %23 : vector<32x128xf32>
      %c0_10 = arith.constant 0 : index
      %c0_11 = arith.constant 0 : index
      %c0_12 = arith.constant 0 : index
      %c0_13 = arith.constant 0 : index
      %25 = vector.load %arg4[%c0_10, %c0_11, %c0_12, %c0_13] : memref<1x3x8x128xf32, #tpu.memory_space<vmem>>, vector<1x1x8x128xf32>
      %26 = vector.shape_cast %25 : vector<1x1x8x128xf32> to vector<8x128xf32>
      %27 = vector.shape_cast %24 : vector<32x128xf32> to vector<4x8x128xf32>
      %cst_14 = arith.constant dense<0.000000e+00> : vector<8x128xf32>
      %28 = vector.multi_reduction <add>, %27, %cst_14 [0] : vector<4x8x128xf32> to vector<8x128xf32>
      %29 = arith.addf %26, %28 : vector<8x128xf32>
      %c0_15 = arith.constant 0 : index
      %c0_16 = arith.constant 0 : index
      %c0_17 = arith.constant 0 : index
      %c0_18 = arith.constant 0 : index
      %30 = vector.load %arg4[%c0_15, %c0_16, %c0_17, %c0_18] : memref<1x3x8x128xf32, #tpu.memory_space<vmem>>, vector<1x1x8x128xf32>
      %31 = vector.shape_cast %30 : vector<1x1x8x128xf32> to vector<8x128xf32>
      %32 = vector.shape_cast %29 : vector<8x128xf32> to vector<1x1x8x128xf32>
      tpu.vector_store %arg4[%c0_15, %c0_16, %c0_17, %c0_18], %32 {strides = array<i32>} : memref<1x3x8x128xf32, #tpu.memory_space<vmem>>, vector<1x1x8x128xf32>,
      %c0_19 = arith.constant 0 : index
      %c1 = arith.constant 1 : index
      %c0_20 = arith.constant 0 : index
      %c0_21 = arith.constant 0 : index
      %33 = vector.load %arg4[%c0_19, %c1, %c0_20, %c0_21] : memref<1x3x8x128xf32, #tpu.memory_space<vmem>>, vector<1x1x8x128xf32>
      %34 = vector.shape_cast %33 : vector<1x1x8x128xf32> to vector<8x128xf32>
      %35 = vector.shape_cast %21 : vector<32x128xf32> to vector<4x8x128xf32>
      %cst_22 = arith.constant dense<0.000000e+00> : vector<8x128xf32>
      %36 = vector.multi_reduction <add>, %35, %cst_22 [0] : vector<4x8x128xf32> to vector<8x128xf32>
      %37 = arith.addf %34, %36 : vector<8x128xf32>
      %c0_23 = arith.constant 0 : index
      %c1_24 = arith.constant 1 : index
      %c0_25 = arith.constant 0 : index
      %c0_26 = arith.constant 0 : index
      %38 = vector.load %arg4[%c0_23, %c1_24, %c0_25, %c0_26] : memref<1x3x8x128xf32, #tpu.memory_space<vmem>>, vector<1x1x8x128xf32>
      %39 = vector.shape_cast %38 : vector<1x1x8x128xf32> to vector<8x128xf32>
      %40 = vector.shape_cast %37 : vector<8x128xf32> to vector<1x1x8x128xf32>
      tpu.vector_store %arg4[%c0_23, %c1_24, %c0_25, %c0_26], %40 {strides = array<i32>} : memref<1x3x8x128xf32, #tpu.memory_space<vmem>>, vector<1x1x8x128xf32>,
      %c0_27 = arith.constant 0 : index
      %c2 = arith.constant 2 : index
      %c0_28 = arith.constant 0 : index
      %c0_29 = arith.constant 0 : index
      %41 = vector.load %arg4[%c0_27, %c2, %c0_28, %c0_29] : memref<1x3x8x128xf32, #tpu.memory_space<vmem>>, vector<1x1x8x128xf32>
      %42 = vector.shape_cast %41 : vector<1x1x8x128xf32> to vector<8x128xf32>
      %43 = vector.shape_cast %23 : vector<32x128xf32> to vector<4x8x128xf32>
      %cst_30 = arith.constant dense<0.000000e+00> : vector<8x128xf32>
      %44 = vector.multi_reduction <add>, %43, %cst_30 [0] : vector<4x8x128xf32> to vector<8x128xf32>
      %45 = arith.addf %42, %44 : vector<8x128xf32>
      %c0_31 = arith.constant 0 : index
      %c2_32 = arith.constant 2 : index
      %c0_33 = arith.constant 0 : index
      %c0_34 = arith.constant 0 : index
      %46 = vector.load %arg4[%c0_31, %c2_32, %c0_33, %c0_34] : memref<1x3x8x128xf32, #tpu.memory_space<vmem>>, vector<1x1x8x128xf32>
      %47 = vector.shape_cast %46 : vector<1x1x8x128xf32> to vector<8x128xf32>
      %48 = vector.shape_cast %45 : vector<8x128xf32> to vector<1x1x8x128xf32>
      tpu.vector_store %arg4[%c0_31, %c2_32, %c0_33, %c0_34], %48 {strides = array<i32>} : memref<1x3x8x128xf32, #tpu.memory_space<vmem>>, vector<1x1x8x128xf32>,
    } else {
    }
    return
  }
  func.func @transform_0(%arg0: i32, %arg1: i32) -> (i32, i32) {
    %c1_i32 = arith.constant 1 : i32
    %0 = arith.muli %arg0, %c1_i32 : i32
    %1 = arith.addi %0, %arg1 : i32
    %c0_i32 = arith.constant 0 : i32
    %2 = arith.minsi %1, %c0_i32 : i32
    %c0_i32_0 = arith.constant 0 : i32
    %c0_i32_1 = arith.constant 0 : i32
    return %2, %c0_i32_0 : i32, i32
  }
  func.func @transform_1(%arg0: i32, %arg1: i32) -> (i32, i32) {
    %c1_i32 = arith.constant 1 : i32
    %0 = arith.muli %arg0, %c1_i32 : i32
    %1 = arith.addi %0, %arg1 : i32
    %c0_i32 = arith.constant 0 : i32
    %2 = arith.minsi %1, %c0_i32 : i32
    %c0_i32_0 = arith.constant 0 : i32
    %c0_i32_1 = arith.constant 0 : i32
    return %2, %c0_i32_0 : i32, i32
  }
  func.func @transform_2(%arg0: i32, %arg1: i32) -> (i32, i32, i32, i32) {
    %c0_i32 = arith.constant 0 : i32
    %c0_i32_0 = arith.constant 0 : i32
    %c0_i32_1 = arith.constant 0 : i32
    %c0_i32_2 = arith.constant 0 : i32
    return %arg0, %c0_i32, %c0_i32_0, %c0_i32_1 : i32, i32, i32, i32
  }
}

</mosaic_0001>

<llo_original>
// kernel: tpu_custom_call.1
$region0: #{tpu_custom_call.1}
  #allocation0 [shape = 'u32[]', space=smem, size = 0x4, offset = 0x4, fixed_abs, tag = 'smem constant byte address 0x4 - core index']
  #allocation1 [shape = 'u32[144,128]{1,0:T(1,128)}', space=vmem, size = 0x12000, scoped, tag = 'internal scratch']
  %s0 = inlined_call_operand.hbm [shape: f32[16,128], index: 0, kind: input, shape index: {}]
  %s1 = inlined_call_operand.hbm [shape: f32[16,128], index: 1, kind: input, shape index: {}]
  %s2 = inlined_call_operand.hbm [shape: f32[1,3,8,128], index: 2, kind: output, shape index: {}]
  %s3 = sld [smem:[#allocation0]]
  $region38: #{tpu_custom_call.1} parent=0
    _
  %s5 = ssub.s32 1, %s3
  %s6 = scalar_select 0, %s5, %s3
  $region1: #{tpu_custom_call.1} parent=0
    #allocation2 [shape = 'u8[16384]{0}', space=vmem, size = 0x4000, scoped, tag = 'input window, operand 0, single buffered']
    #allocation3 [shape = 's32[1]{0}', space=sflag, size = 0x4, scoped, tag = 'scoped memory for tpu_custom_call.1']
    #allocation4 [shape = 's32[1]{0}', space=sflag, size = 0x4, scoped, tag = 'scoped memory for tpu_custom_call.1']
    #allocation5 [shape = 'u8[16384]{0}', space=vmem, size = 0x4000, scoped, tag = 'input window, operand 1, single buffered']
    #allocation6 [shape = 's32[1]{0}', space=sflag, size = 0x4, scoped, tag = 'scoped memory for tpu_custom_call.1']
    #allocation7 [shape = 'u8[12288]{0}', space=vmem, size = 0x3000, scoped, tag = 'output window, operand 0, single buffered']
    %7 = vsyncpa [#allocation3], 0
    %8 = vsyncpa [#allocation6], 0
    %9 = vsyncpa [#allocation4], 0
    // Predicated region
    $region2: #{tpu_custom_call.1} parent=1 // pred_check
      _
    $region3: #{tpu_custom_call.1} parent=1 // pred_check_branch
      %11 = sbr.rel (0) target = $region5
    $region4: #{tpu_custom_call.1} parent=1 // pred_region
      %s12 = sadd.s32 0, 0
      %p13 = scmp.lt.s32.totalorder %s12, 0
      %s14 = scalar_select %p13, %s12, 0
      %s15 = smul.u32 4, %s14
      %s16 = ssub.s32 2, %s15
      %s17 = smul.u32 128, %s16
      %s19 = ssub.s32 512, %s17
      %20 = vsyncadd [#allocation3], %s19
      %p21 = scmp.ne.s32.totalorder 0, %s17
      %s22 = smul.addr %s15, 128
      %s23 = scalar_lea.hbm %s0, %s22
      %s24 = smul.u32 8, %s16
      %s25 = sshll.u32 [#allocation2], 4
      %s26 = int_to_ptr.vmem [resolvable:$true] %s25
      %s27 = sshll.u32 %s24, 4
      %31 = dma.hbm_to_vmem [thread:$0]  (%p21), %s23, %s27, %s26, [#allocation3], 128, 128, 8
    $region5: #{tpu_custom_call.1} parent=1 // pred_fallthru
      _
    // Predicated region
    $region6: #{tpu_custom_call.1} parent=1 // pred_check
      _
    $region7: #{tpu_custom_call.1} parent=1 // pred_check_branch
      %33 = sbr.rel (0) target = $region9
    $region8: #{tpu_custom_call.1} parent=1 // pred_region
      %s34 = sadd.s32 0, 0
      %p35 = scmp.lt.s32.totalorder %s34, 0
      %s36 = scalar_select %p35, %s34, 0
      %s37 = smul.u32 4, %s36
      %s38 = ssub.s32 2, %s37
      %s39 = smul.u32 128, %s38
      %s41 = ssub.s32 512, %s39
      %42 = vsyncadd [#allocation6], %s41
      %p43 = scmp.ne.s32.totalorder 0, %s39
      %s44 = smul.addr %s37, 128
      %s45 = scalar_lea.hbm %s1, %s44
      %s46 = smul.u32 8, %s38
      %s47 = sshll.u32 [#allocation5], 4
      %s48 = int_to_ptr.vmem [resolvable:$true] %s47
      %s49 = sshll.u32 %s46, 4
      %53 = dma.hbm_to_vmem [thread:$0]  (%p43), %s45, %s49, %s48, [#allocation6], 128, 128, 8
    $region9: #{tpu_custom_call.1} parent=1 // pred_fallthru
      _
    // Predicated region
    $region10: #{tpu_custom_call.1} parent=1 // pred_check
      _
    $region11: #{tpu_custom_call.1} parent=1 // pred_check_branch
      %55 = sbr.rel (0) target = $region13
    $region12: #{tpu_custom_call.1} parent=1 // pred_region
      %56 = dma.done [#allocation3], 512
    $region13: #{tpu_custom_call.1} parent=1 // pred_fallthru
      _
    // Predicated region
    $region14: #{tpu_custom_call.1} parent=1 // pred_check
      _
    $region15: #{tpu_custom_call.1} parent=1 // pred_check_branch
      %58 = sbr.rel (0) target = $region17
    $region16: #{tpu_custom_call.1} parent=1 // pred_region
      %59 = dma.done [#allocation6], 512
    $region17: #{tpu_custom_call.1} parent=1 // pred_fallthru
      _
    %s60 = sadd.s32 0, 0
    %p61 = scmp.lt.s32.totalorder %s60, 0
    %s62 = scalar_select %p61, %s60, 0
    %s63 = smul.u32 4, %s62
    %s64 = ssub.s32 2, %s63
    %s65 = smul.u32 128, %s64
    %s66 = sadd.s32 0, 0
    %p67 = scmp.lt.s32.totalorder %s66, 0
    %s68 = scalar_select %p67, %s66, 0
    %s69 = smul.u32 4, %s68
    %s70 = ssub.s32 2, %s69
    %s71 = smul.u32 128, %s70
    %p72 = scmp.eq.s32.totalorder 0, 0
    // Predicated region
    $region18: #{tpu_custom_call.1} parent=1 // pred_check
      %p73 = pneg %p72
    $region19: #{tpu_custom_call.1} parent=1 // pred_check_branch
      %75 = sbr.rel (%p73) target = $region21
    $region20: #{tpu_custom_call.1} parent=1 // pred_region
      %76 = vst [vmem:[#allocation7] sm:$0xff] 0.0
      %77 = vst [vmem:[#allocation7 + $0x8] sm:$0xff] 0.0
      %78 = vst [vmem:[#allocation7 + $0x10] sm:$0xff] 0.0
    $region21: #{tpu_custom_call.1} parent=1 // pred_fallthru
      _
    %v79 = vld [vmem:[#allocation2] sm:$0xff]
    %v80 = vld [vmem:[#allocation2 + $0x8] sm:$0xff]
    %v81 = vld [vmem:[#allocation2 + $0x10] sm:$0xff]
    %v82 = vld [vmem:[#allocation2 + $0x18] sm:$0xff]
    %v83 = vld [vmem:[#allocation5] sm:$0xff]
    %v84 = vld [vmem:[#allocation5 + $0x8] sm:$0xff]
    %v85 = vld [vmem:[#allocation5 + $0x10] sm:$0xff]
    %v86 = vld [vmem:[#allocation5 + $0x18] sm:$0xff]
    %s87 = sadd.s32 0, 0
    %s88 = sadd.s32 %s87, 1
    %s89 = smul.u32 %s88, 32
    %p90 = scmp.gt.s32.totalorder %s89, 16
    %p91 = scmp.le.s32.totalorder %s89, 16
    // Predicated region
    $region22: #{tpu_custom_call.1} parent=1 // pred_check
      %p92 = pneg %p91
    $region23: #{tpu_custom_call.1} parent=1 // pred_check_branch
      %94 = sbr.rel (%p92) target = $region25
    $region24: #{tpu_custom_call.1} parent=1 // pred_region
      %v95 = vmul.f32 %v79, %v83
      %v96 = vmul.f32 %v80, %v84
      %v97 = vmul.f32 %v81, %v85
      %v98 = vmul.f32 %v82, %v86
      %v99 = vld [vmem:[#allocation7] sm:$0xff]
      %v100 = vadd.f32 %v95, %v96
      %v101 = vadd.f32 %v100, %v97
      %v102 = vadd.f32 %v101, %v98
      %v103 = vadd.f32 %v99, %v102
      %104 = vst [vmem:[#allocation7] sm:$0xff] %v103
      %s105 = scalar_lea.vmem [#allocation7], 8
      %v106 = vld [vmem:[%s105] sm:$0xff]
      %v107 = vadd.f32 %v79, %v80
      %v108 = vadd.f32 %v107, %v81
      %v109 = vadd.f32 %v108, %v82
      %v110 = vadd.f32 %v106, %v109
      %111 = vst [vmem:[%s105] sm:$0xff] %v110
      %s112 = scalar_lea.vmem [#allocation7], 16
      %v113 = vld [vmem:[%s112] sm:$0xff]
      %v114 = vadd.f32 %v83, %v84
      %v115 = vadd.f32 %v114, %v85
      %v116 = vadd.f32 %v115, %v86
      %v117 = vadd.f32 %v113, %v116
      %118 = vst [vmem:[%s112] sm:$0xff] %v117
    $region25: #{tpu_custom_call.1} parent=1 // pred_fallthru
      _
    // Predicated region
    $region26: #{tpu_custom_call.1} parent=1 // pred_check
      %p119 = pneg %p90
    $region27: #{tpu_custom_call.1} parent=1 // pred_check_branch
      %121 = sbr.rel (%p119) target = $region29
    $region28: #{tpu_custom_call.1} parent=1 // pred_region
      %s122 = smul.u32 %s87, 32
      %s123 = ssub.s32 16, %s122
      %v124 = vlaneseq
      %v125 = vshrl.u32 %v124, 7
      %v126 = vadd.s32 %v125, 8
      %v127 = vadd.s32 %v125, 16
      %v128 = vadd.s32 %v125, 24
      %v129 = vstv %s123
      %vm130 = vcmp.lt.s32.totalorder %v125, %v129
      %vm131 = vcmp.lt.s32.totalorder %v126, %v129
      %vm132 = vcmp.lt.s32.totalorder %v127, %v129
      %vm133 = vcmp.lt.s32.totalorder %v128, %v129
      %v134 = vsel %vm130, %v79, 0.0
      %v135 = vsel %vm131, %v80, 0.0
      %v136 = vsel %vm132, %v81, 0.0
      %v137 = vsel %vm133, %v82, 0.0
      %v138 = vsel %vm130, %v83, 0.0
      %v139 = vsel %vm131, %v84, 0.0
      %v140 = vsel %vm132, %v85, 0.0
      %v141 = vsel %vm133, %v86, 0.0
      %v142 = vmul.f32 %v134, %v138
      %v143 = vmul.f32 %v135, %v139
      %v144 = vmul.f32 %v136, %v140
      %v145 = vmul.f32 %v137, %v141
      %v146 = vld [vmem:[#allocation7] sm:$0xff]
      %v147 = vadd.f32 %v142, %v143
      %v148 = vadd.f32 %v147, %v144
      %v149 = vadd.f32 %v148, %v145
      %v150 = vadd.f32 %v146, %v149
      %151 = vst [vmem:[#allocation7] sm:$0xff] %v150
      %s152 = scalar_lea.vmem [#allocation7], 8
      %v153 = vld [vmem:[%s152] sm:$0xff]
      %v154 = vadd.f32 %v134, %v135
      %v155 = vadd.f32 %v154, %v136
      %v156 = vadd.f32 %v155, %v137
      %v157 = vadd.f32 %v153, %v156
      %158 = vst [vmem:[%s152] sm:$0xff] %v157
      %s159 = scalar_lea.vmem [#allocation7], 16
      %v160 = vld [vmem:[%s159] sm:$0xff]
      %v161 = vadd.f32 %v138, %v139
      %v162 = vadd.f32 %v161, %v140
      %v163 = vadd.f32 %v162, %v141
      %v164 = vadd.f32 %v160, %v163
      %165 = vst [vmem:[%s159] sm:$0xff] %v164
    $region29: #{tpu_custom_call.1} parent=1 // pred_fallthru
      _
    // Predicated region
    $region30: #{tpu_custom_call.1} parent=1 // pred_check
      _
    $region31: #{tpu_custom_call.1} parent=1 // pred_check_branch
      %167 = sbr.rel (0) target = $region33
    $region32: #{tpu_custom_call.1} parent=1 // pred_region
      %s169 = ssub.s32 384, 384
      %170 = vsyncadd [#allocation4], %s169
      %s171 = sshll.u32 [#allocation7], 4
      %s172 = int_to_ptr.vmem [resolvable:$true] %s171
      %177 = dma.vmem_to_hbm [thread:$0]  %s172, 384, %s2, [#allocation4], 128, 128, 8
    $region33: #{tpu_custom_call.1} parent=1 // pred_fallthru
      _
    // Predicated region
    $region34: #{tpu_custom_call.1} parent=1 // pred_check
      _
    $region35: #{tpu_custom_call.1} parent=1 // pred_check_branch
      %179 = sbr.rel (0) target = $region37
    $region36: #{tpu_custom_call.1} parent=1 // pred_region
      %180 = dma.done [#allocation4], 384
    $region37: #{tpu_custom_call.1} parent=1 // pred_fallthru
      _
    %181 = vsyncpa [#allocation3], 1
    %182 = vsyncpa [#allocation6], 1
    %183 = vsyncpa [#allocation4], 1

</llo_original>
